<compile_context>
chip_gen: v7x
topology: tpu7x:2x2x1
jax: 0.10.0
libtpu: 0.0.40
codegen_flags: <defaults>
</compile_context>

<pallas_src>
import math

import jax
import jax.numpy as jnp
from jax.experimental import pallas as pl
from jax.experimental.pallas import tpu as pltpu

N_TYPES = 4 + 1  # as in the PyTorch module


def _edge_tile_kernel(lp_ref, rpf_ref, el_ref, o_ref):
    # lp_ref : [TI, E]       left projection rows for this row tile (bias folded)
    # rpf_ref: [NJ, TJ*E]    lane-flattened right projection, whole batch row
    # el_ref : [E, TJ*E]     lane-replication matrix (tiled identity), DMA'd once
    # o_ref  : [1, TI, TJ*E] output tile (lane-dense)
    j = pl.program_id(2)
    # Lane-replicate lp across the TJ column blocks with one small MXU matmul:
    # (lp @ el)[r, c*E + e] == lp[r, e].  MXU is otherwise idle here.
    lp_rep = jnp.dot(lp_ref[...], el_ref[...],
                     preferred_element_type=jnp.float32)          # [TI, TJ*E]
    rp_row = rpf_ref[pl.ds(j, 1), :]                              # [1, TJ*E]
    o_ref[0] = (lp_rep + rp_row).astype(o_ref.dtype)


def _pick_tiles(L, E, out_itemsize, tile_budget_bytes, max_ti=256):
    """Pick (ti, tj) dividing L with ti % 8 == 0 (or ti == L) and tj*E % 128 == 0
    (or tj == L), keeping one output block under ~tile_budget_bytes."""
    divs = [d for d in range(1, L + 1) if L % d == 0]
    ti_cands = [d for d in divs if d % 8 == 0 and d <= max_ti]
    ti = max(ti_cands) if ti_cands else L
    tj_cands = [d for d in divs if (d * E) % 128 == 0]
    if tj_cands:
        fitting = [d for d in tj_cands if ti * d * E * out_itemsize <= tile_budget_bytes]
        tj = max(fitting) if fitting else min(tj_cands)
    else:
        tj = L  # fallback: full row; block last dim == full array dim (legal)
    return ti, tj


def edge_module_forward(token_embs, token_types, left_transform, right_transform,
                        out_w, out_b, *, out_dtype=jnp.float32,
                        tile_budget_bytes=4 * 1024 * 1024):
    B, L, D = token_embs.shape
    E = out_b.shape[0]

    x = token_embs.astype(jnp.float32)
    types = token_types.astype(jnp.int32)

    # --- exact algebraic fusion of (type-gathered transform) + output Linear ---
    #   W @ concat(left_i, right_j) + b
    #     = x_i @ (LT[t_i].T @ W[:, :D].T) + x_j @ (RT[t_j].T @ W[:, D:].T) + b
    wlf = jnp.einsum('tmd,em->tde', left_transform.astype(jnp.float32),
                     out_w[:, :D].astype(jnp.float32))            # [T, D, E]
    wrf = jnp.einsum('tmd,em->tde', right_transform.astype(jnp.float32),
                     out_w[:, D:].astype(jnp.float32))            # [T, D, E]

    # --- per-token projections hoisted out of the kernel (plain JAX) ---
    # jnp.where chain == exact gather semantics (no 0*inf hazard of a masked sum).
    # NOTE: types outside [0, n_types) yield a zero contribution (PyTorch would
    # raise an indexing error).
    def typed_project(w_fused):
        out = jnp.zeros((B, L, E), jnp.float32)
        for t in range(w_fused.shape[0]):
            proj = jnp.einsum('bld,de->ble', x, w_fused[t])
            out = jnp.where((types == t)[..., None], proj, out)
        return out

    lp = typed_project(wlf) + out_b.astype(jnp.float32)   # bias folded once, [B, L, E]
    rp = typed_project(wrf)                                # [B, L, E]

    out_itemsize = jnp.dtype(out_dtype).itemsize
    ti, tj = _pick_tiles(L, E, out_itemsize, tile_budget_bytes)
    n_i, n_j = L // ti, L // tj

    # Lane-flattened right projection: rpf[b, jb, c*E + e] = rp[b, jb*tj + c, e].
    rpf = rp.reshape(B, n_j, tj * E)
    # Lane-replication matrix: (A @ el)[r, c*E + e] == A[r, e]. Its block index is
    # constant so Pallas DMAs it exactly once; keeping it as an input (rather than
    # iota-generating it per step) keeps per-step VPU work minimal, which matters
    # on v7x where the output write time shrinks.
    el = jnp.tile(jnp.eye(E, dtype=jnp.float32), (1, tj))          # [E, tj*E]

    # VMEM accounting: double-buffered output block + EL + lp/rpf blocks + one
    # f32 temp for lp_rep.  Comfortable on v7x's 64 MiB/TC with the default
    # 4 MiB tile budget.
    out_block_bytes = ti * tj * E * out_itemsize
    vmem_est = (2 * out_block_bytes
                + 2 * ti * E * 4
                + 2 * n_j * tj * E * 4
                + 2 * E * tj * E * 4
                + ti * tj * E * 4)
    vmem_limit = int(min(100 * 2**20, max(32 * 2**20, 2 * vmem_est)))

    cost = pl.CostEstimate(
        flops=2 * B * L * L * E * E,            # lane-replication matmuls
        transcendentals=0,
        bytes_accessed=(B * L * L * E * out_itemsize   # dominant: output write
                        + 2 * B * L * E * 4            # lp + rpf reads
                        + E * tj * E * 4),             # el read (once)
    )

    out_flat = pl.pallas_call(
        _edge_tile_kernel,
        out_shape=jax.ShapeDtypeStruct((B, L, L * E), out_dtype),
        grid_spec=pltpu.PrefetchScalarGridSpec(
            num_scalar_prefetch=0,
            grid=(B, n_i, n_j),
            in_specs=[
                pl.BlockSpec((None, ti, E), lambda b, i, j: (b, i, 0)),        # lp
                pl.BlockSpec((None, n_j, tj * E), lambda b, i, j: (b, 0, 0)),  # rpf
                pl.BlockSpec((E, tj * E), lambda b, i, j: (0, 0)),             # el
            ],
            out_specs=pl.BlockSpec((1, ti, tj * E), lambda b, i, j: (b, i, j)),
        ),
        compiler_params=pltpu.CompilerParams(
            # All tiles are independent now (no scratch carried across steps),
            # so batch AND row axes are parallel -> megacore sharding even at B=1.
            dimension_semantics=("parallel", "parallel", "arbitrary"),
            vmem_limit_bytes=vmem_limit,
        ),
        cost_estimate=cost,
    )(lp, rpf, el)

    # Contiguous reshape back to the module's [B, L, L, E] layout (free).
    return out_flat.reshape(B, L, L, E)


def init_params(key, hidden_size, edge_hidden_size):
    """Deterministic synthetic parameter init (shapes match the PyTorch module)."""
    k1, k2, k3, k4 = jax.random.split(key, 4)
    # xavier_uniform_ on [n_types, h, h]: fan_in = h*h, fan_out = n_types*h
    fan_in = hidden_size * hidden_size
    fan_out = N_TYPES * hidden_size
    bound = math.sqrt(6.0 / (fan_in + fan_out))
    left_transform = jax.random.uniform(
        k1, (N_TYPES, hidden_size, hidden_size), jnp.float32, -bound, bound)
    right_transform = jax.random.uniform(
        k2, (N_TYPES, hidden_size, hidden_size), jnp.float32, -bound, bound)
    # nn.Linear(hidden*2, edge_hidden) default init bounds
    in_f = 2 * hidden_size
    wb = 1.0 / math.sqrt(in_f)
    out_w = jax.random.uniform(k3, (edge_hidden_size, in_f), jnp.float32, -wb, wb)
    out_b = jax.random.uniform(k4, (edge_hidden_size,), jnp.float32, -wb, wb)
    return left_transform, right_transform, out_w, out_b


def reference_forward(token_embs, token_types, LT, RT, W, b):
    """Pure-JAX replica of the PyTorch forward, for correctness checking."""
    lt = LT[token_types]                                   # [B, L, D, D]
    rt = RT[token_types]
    left = jnp.einsum('bld,blmd->blm', token_embs, lt)     # [B, L, D]
    right = jnp.einsum('bld,blmd->blm', token_embs, rt)
    B, L, D = token_embs.shape
    left_rep = jnp.broadcast_to(left[:, :, None, :], (B, L, L, D))
    right_rep = jnp.broadcast_to(right[:, None, :, :], (B, L, L, D))
    edge = jnp.concatenate([left_rep, right_rep], axis=-1)  # [B, L, L, 2D]
    return edge @ W.T + b                                   # [B, L, L, E]


if __name__ == "__main__":
    B, L, D, E = 2, 8, 32, 16  # batch, seq, hidden_size, edge_hidden_size

    key = jax.random.PRNGKey(0)
    kx, kt, kp = jax.random.split(key, 3)

    token_embs = jax.random.normal(kx, (B, L, D), jnp.float32)
    token_types = jax.random.randint(kt, (B, L), 0, N_TYPES, jnp.int32)
    LT, RT, W, bvec = init_params(kp, D, E)

    out = edge_module_forward(token_embs, token_types, LT, RT, W, bvec)
    out = jax.block_until_ready(out)

    ref = reference_forward(token_embs, token_types, LT, RT, W, bvec)
    assert out.shape == (B, L, L, E), out.shape
    assert jnp.allclose(out, ref, atol=1e-4, rtol=1e-4), \
        float(jnp.max(jnp.abs(out - ref)))

    print("KERNEL_OK")
</pallas_src>

<mosaic_0001>
module attributes {stable_mosaic.version = 11 : i64} {
  func.func @_edge_tile_kernel(%arg0: i32, %arg1: i32, %arg2: i32, %arg3: memref<1x8x16xf32, #tpu.memory_space<vmem>>, %arg4: memref<1x1x128xf32, #tpu.memory_space<vmem>>, %arg5: memref<16x128xf32, #tpu.memory_space<vmem>>, %arg6: memref<1x8x128xf32, #tpu.memory_space<vmem>>) attributes {dimension_semantics = [#tpu.dimension_semantics<parallel>, #tpu.dimension_semantics<parallel>, #tpu.dimension_semantics<arbitrary>], iteration_bounds = array<i64: 2, 1, 1>, scalar_prefetch = 0 : i64, scratch_operands = 0 : i64, tpu.core_type = #tpu.core_type<tc>, window_params = [{transform_indices = @transform_0, window_bounds = array<i64: 1, 8, 16>}, {transform_indices = @transform_1, window_bounds = array<i64: 1, 1, 128>}, {pipeline_mode = #tpu.pipeline_mode<synchronous>, transform_indices = @transform_2, window_bounds = array<i64: 16, 128>}, {transform_indices = @transform_3, window_bounds = array<i64: 1, 8, 128>}]} {
    %c0 = arith.constant 0 : index
    %c0_0 = arith.constant 0 : index
    %c0_1 = arith.constant 0 : index
    %0 = vector.load %arg3[%c0, %c0_0, %c0_1] : memref<1x8x16xf32, #tpu.memory_space<vmem>>, vector<1x8x16xf32>
    %1 = vector.shape_cast %0 : vector<1x8x16xf32> to vector<8x16xf32>
    %c0_2 = arith.constant 0 : index
    %c0_3 = arith.constant 0 : index
    %2 = vector.load %arg5[%c0_2, %c0_3] : memref<16x128xf32, #tpu.memory_space<vmem>>, vector<16x128xf32>
    %cst = arith.constant dense<0.000000e+00> : vector<8x128xf32>
    %3 = tpu.matmul %1, %2, %cst {dimension_numbers = #tpu.dot_dimension_numbers<[1], [0], [0], [1], [0, 0, 1, 1], [], []>} : vector<8x16xf32>, vector<16x128xf32>, vector<8x128xf32> -> vector<8x128xf32>
    %c0_4 = arith.constant 0 : index
    %4 = arith.index_cast %arg2 : i32 to index
    %c0_5 = arith.constant 0 : index
    %5 = vector.load %arg4[%c0_4, %4, %c0_5] : memref<1x1x128xf32, #tpu.memory_space<vmem>>, vector<1x1x128xf32>
    %6 = vector.shape_cast %5 : vector<1x1x128xf32> to vector<1x128xf32>
    %7 = vector.broadcast %6 : vector<1x128xf32> to vector<8x128xf32>
    %8 = arith.addf %3, %7 : vector<8x128xf32>
    %c0_6 = arith.constant 0 : index
    %c0_7 = arith.constant 0 : index
    %c0_8 = arith.constant 0 : index
    %9 = vector.load %arg6[%c0_6, %c0_7, %c0_8] : memref<1x8x128xf32, #tpu.memory_space<vmem>>, vector<1x8x128xf32>
    %10 = vector.shape_cast %9 : vector<1x8x128xf32> to vector<8x128xf32>
    %11 = vector.shape_cast %8 : vector<8x128xf32> to vector<1x8x128xf32>
    tpu.vector_store %arg6[%c0_6, %c0_7, %c0_8], %11 {strides = array<i32>} : memref<1x8x128xf32, #tpu.memory_space<vmem>>, vector<1x8x128xf32>,
    return
  }
  func.func @transform_0(%arg0: i32, %arg1: i32, %arg2: i32) -> (i32, i32, i32) {
    %c0_i32 = arith.constant 0 : i32
    %c0_i32_0 = arith.constant 0 : i32
    return %arg0, %arg1, %c0_i32 : i32, i32, i32
  }
  func.func @transform_1(%arg0: i32, %arg1: i32, %arg2: i32) -> (i32, i32, i32) {
    %c0_i32 = arith.constant 0 : i32
    %c0_i32_0 = arith.constant 0 : i32
    %c0_i32_1 = arith.constant 0 : i32
    return %arg0, %c0_i32, %c0_i32_0 : i32, i32, i32
  }
  func.func @transform_2(%arg0: i32, %arg1: i32, %arg2: i32) -> (i32, i32) {
    %c0_i32 = arith.constant 0 : i32
    %c0_i32_0 = arith.constant 0 : i32
    %c0_i32_1 = arith.constant 0 : i32
    return %c0_i32, %c0_i32_0 : i32, i32
  }
  func.func @transform_3(%arg0: i32, %arg1: i32, %arg2: i32) -> (i32, i32, i32) {
    %c0_i32 = arith.constant 0 : i32
    return %arg0, %arg1, %arg2 : i32, i32, i32
  }
}

</mosaic_0001>

<llo_original>
// kernel: tpu_custom_call.1
$region0: #{tpu_custom_call.1}
  #allocation0 [shape = 'u32[]', space=smem, size = 0x4, offset = 0x4, fixed_abs, tag = 'smem constant byte address 0x4 - core index']
  #allocation1 [shape = 'u32[144,128]{1,0:T(1,128)}', space=vmem, size = 0x12000, scoped, tag = 'internal scratch']
  %s0 = inlined_call_operand.hbm [shape: f32[2,8,16], index: 0, kind: input, shape index: {}]
  %s1 = inlined_call_operand.vmem [shape: f32[2,1,128], index: 1, kind: input, shape index: {}]
  %s2 = inlined_call_operand.hbm [shape: f32[16,128], index: 2, kind: input, shape index: {}]
  %s3 = inlined_call_operand.hbm [shape: f32[2,8,128], index: 3, kind: output, shape index: {}]
  %s4 = sld [smem:[#allocation0]]
  $region53: #{tpu_custom_call.1} parent=0
    _
  %s6 = ssub.s32 1, %s4
  %s7 = scalar_select 0, %s6, %s4
  $region1: #{tpu_custom_call.1} parent=0
    #allocation2 [shape = 'u8[8192]{0}', space=vmem, size = 0x2000, scoped, tag = 'input window, operand 0']
    #allocation3 [shape = 's32[2]{0}', space=sflag, size = 0x8, scoped, tag = 'scoped memory for tpu_custom_call.1']
    #allocation4 [shape = 's32[2]{0}', space=sflag, size = 0x8, scoped, tag = 'scoped memory for tpu_custom_call.1']
    #allocation5 [shape = 'u8[8192]{0}', space=vmem, size = 0x2000, scoped, tag = 'input window, operand 2, single buffered']
    #allocation6 [shape = 's32[1]{0}', space=sflag, size = 0x4, scoped, tag = 'scoped memory for tpu_custom_call.1']
    #allocation7 [shape = 'u8[8192]{0}', space=vmem, size = 0x2000, scoped, tag = 'output window, operand 0']
    %8 = vsyncpa [#allocation3], 0
    %s9 = scalar_lea.sflag [#allocation3], 1
    %10 = vsyncpa %s9, 0
    %11 = vsyncpa [#allocation6], 0
    %12 = vsyncpa [#allocation4], 0
    %s13 = scalar_lea.sflag [#allocation4], 1
    %14 = vsyncpa %s13, 0
    loop: start=0, step=1, limit=4
    $region2: #{tpu_custom_call.1} parent=1 // loop_pre_header
      _
    $region3: #{tpu_custom_call.1} parent=1 // loop_header
      %s16 = sphi 0, %s20
      %p17 = scmp.ge.s32.totalorder %s16, 4
      %s23 = sphi 0, %s42
      %s24 = sphi 0, %s38
      %s25 = sphi 0, %s34
      %s26 = sphi 0, %s23
      %s27 = sphi 0, %s24
      %s28 = sphi 0, %s25
      %s29 = sphi 0, %s26
      %s30 = sphi 0, %s27
      %s31 = sphi 0, %s28
      %s47 = sphi 0, %s49
      %s50 = sphi 0, %s47
      %s51 = sphi 0, %s50
      %s67 = sphi 0, %s51
      %s73 = sphi 0, %s75
      %s76 = sphi 0, %s73
      %s77 = sphi 0, %s76
      %s93 = sphi 0, %s77
      %s97 = sphi 0, %s97
      %s99 = sphi 0, %s97
      %s100 = sphi 0, %s99
      %s114 = sphi 0, %s100
      %s124 = sphi 0, %s126
      %s127 = sphi 0, %s124
      %s128 = sphi 0, %s127
      %s144 = sphi 0, %s128
    $region4: #{tpu_custom_call.1} parent=1 // loop_header_branch
      %19 = sbr.rel (%p17) target = $region8
    $region5: #{tpu_custom_call.1} parent=1 // loop_body
      %s21 = ssub.s32 %s16, 1
      %s22 = ssub.s32 %s16, 2
      %s32 = sadd.s32 1, %s25
      %p33 = scmp.ge.s32.totalorder %s32, 1
      %s34 = scalar_select %p33, 0, %s32
      %s35 = sadd.s32 1, %s24
      %s36 = scalar_select %p33, %s35, %s24
      %p37 = scmp.ge.s32.totalorder %s36, 1
      %s38 = scalar_select %p37, 0, %s36
      %s39 = sadd.s32 1, %s23
      %s40 = scalar_select %p37, %s39, %s23
      %p41 = scmp.ge.s32.totalorder %s40, 2
      %s42 = scalar_select %p41, 0, %s40
      %s43 = ssub.s32 %s23, %s42
      %s44 = ssub.s32 %s24, %s38
      %s45 = sor.u32 %s43, %s44
      %p46 = scmp.eq.s32.totalorder %s45, 0
      %s48 = sadd.s32 %s47, 1
      %s49 = scalar_select %p46, %s47, %s48
      %p52 = pneg %p46
      %p53 = scmp.eq.s32.totalorder %s16, 1
      %p54 = por %p52, %p53
      %p55 = scmp.ne.s32.totalorder %s47, %s50
      %p56 = scmp.eq.s32.totalorder %s16, 0
      %p57 = por %p55, %p56
      %p58 = scmp.ne.s32.totalorder %s47, %s50
      %p59 = scmp.eq.s32.totalorder %s21, 1
      %p60 = por %p58, %p59
      %p61 = scmp.ne.s32.totalorder %s50, %s51
      %p62 = scmp.eq.s32.totalorder %s21, 0
      %p63 = por %p61, %p62
      %p64 = scmp.ne.s32.totalorder %s50, %s51
      %p65 = scmp.eq.s32.totalorder %s22, 1
      %p66 = por %p64, %p65
      %p68 = scmp.ne.s32.totalorder %s51, %s67
      %p69 = scmp.eq.s32.totalorder %s22, 0
      %p70 = por %p68, %p69
      %s71 = ssub.s32 %s23, %s42
      %p72 = scmp.eq.s32.totalorder %s71, 0
      %s74 = sadd.s32 %s73, 1
      %s75 = scalar_select %p72, %s73, %s74
      %p78 = pneg %p72
      %p79 = scmp.eq.s32.totalorder %s16, 1
      %p80 = por %p78, %p79
      %p81 = scmp.ne.s32.totalorder %s73, %s76
      %p82 = scmp.eq.s32.totalorder %s16, 0
      %p83 = por %p81, %p82
      %p84 = scmp.ne.s32.totalorder %s73, %s76
      %p85 = scmp.eq.s32.totalorder %s21, 1
      %p86 = por %p84, %p85
      %p87 = scmp.ne.s32.totalorder %s76, %s77
      %p88 = scmp.eq.s32.totalorder %s21, 0
      %p89 = por %p87, %p88
      %p90 = scmp.ne.s32.totalorder %s76, %s77
      %p91 = scmp.eq.s32.totalorder %s22, 1
      %p92 = por %p90, %p91
      %p94 = scmp.ne.s32.totalorder %s77, %s93
      %p95 = scmp.eq.s32.totalorder %s22, 0
      %p96 = por %p94, %p95
      %s98 = sadd.s32 %s97, 1
      %p101 = scmp.eq.s32.totalorder %s16, 1
      %p102 = scmp.ne.s32.totalorder %s97, %s99
      %p103 = scmp.eq.s32.totalorder %s16, 0
      %p104 = por %p102, %p103
      %p105 = scmp.ne.s32.totalorder %s97, %s99
      %p106 = scmp.eq.s32.totalorder %s21, 1
      %p107 = por %p105, %p106
      %p108 = scmp.ne.s32.totalorder %s99, %s100
      %p109 = scmp.eq.s32.totalorder %s21, 0
      %p110 = por %p108, %p109
      %p111 = scmp.ne.s32.totalorder %s99, %s100
      %p112 = scmp.eq.s32.totalorder %s22, 1
      %p113 = por %p111, %p112
      %p115 = scmp.ne.s32.totalorder %s100, %s114
      %p116 = scmp.eq.s32.totalorder %s22, 0
      %p117 = por %p115, %p116
      %s118 = ssub.s32 %s23, %s42
      %s119 = ssub.s32 %s24, %s38
      %s120 = sor.u32 %s118, %s119
      %s121 = ssub.s32 %s25, %s34
      %s122 = sor.u32 %s120, %s121
      %p123 = scmp.eq.s32.totalorder %s122, 0
      %s125 = sadd.s32 %s124, 1
      %s126 = scalar_select %p123, %s124, %s125
      %p129 = pneg %p123
      %p130 = scmp.eq.s32.totalorder %s16, 1
      %p131 = por %p129, %p130
      %p132 = scmp.ne.s32.totalorder %s124, %s127
      %p133 = scmp.eq.s32.totalorder %s16, 0
      %p134 = por %p132, %p133
      %p135 = scmp.ne.s32.totalorder %s124, %s127
      %p136 = scmp.eq.s32.totalorder %s21, 1
      %p137 = por %p135, %p136
      %p138 = scmp.ne.s32.totalorder %s127, %s128
      %p139 = scmp.eq.s32.totalorder %s21, 0
      %p140 = por %p138, %p139
      %p141 = scmp.ne.s32.totalorder %s127, %s128
      %p142 = scmp.eq.s32.totalorder %s22, 1
      %p143 = por %p141, %p142
      %p145 = scmp.ne.s32.totalorder %s128, %s144
      %p146 = scmp.eq.s32.totalorder %s22, 0
      %p147 = por %p145, %p146
      %p148 = scmp.le.s32.totalorder 1, %s16
      %p149 = scmp.lt.s32.totalorder %s16, 3
      %p150 = pnand %p148, %p149
      %p151 = pneg %p150
      // Predicated region
      $region9: #{tpu_custom_call.1} parent=5 // pred_check
        _
      $region10: #{tpu_custom_call.1} parent=5 // pred_check_branch
        %153 = sbr.rel (%p150) target = $region12
      $region11: #{tpu_custom_call.1} parent=5 // pred_region
        %s154 = ssub.s32 %s16, 1
        // Predicated region
        $region13: #{tpu_custom_call.1} parent=11 // pred_check
          %p155 = pneg %p110
        $region14: #{tpu_custom_call.1} parent=11 // pred_check_branch
          %157 = sbr.rel (%p155) target = $region16
        $region15: #{tpu_custom_call.1} parent=11 // pred_region
          %s159 = ssub.s32 256, 256
          %160 = vsyncadd [#allocation6], %s159
          %s161 = sshll.u32 [#allocation5], 4
          %s162 = int_to_ptr.vmem [resolvable:$true] %s161
          %167 = dma.hbm_to_vmem [thread:$0]  %s2, 256, %s162, [#allocation6], 128, 128, 8
        $region16: #{tpu_custom_call.1} parent=11 // pred_fallthru
          _
      $region12: #{tpu_custom_call.1} parent=5 // pred_fallthru
        _
      %p168 = scmp.lt.s32.totalorder %s16, 2
      // Predicated region
      $region17: #{tpu_custom_call.1} parent=5 // pred_check
        %p169 = pneg %p168
      $region18: #{tpu_custom_call.1} parent=5 // pred_check_branch
        %171 = sbr.rel (%p169) target = $region20
      $region19: #{tpu_custom_call.1} parent=5 // pred_region
        // Predicated region
        $region21: #{tpu_custom_call.1} parent=19 // pred_check
          %p172 = pneg %p57
        $region22: #{tpu_custom_call.1} parent=19 // pred_check_branch
          %174 = sbr.rel (%p172) target = $region24
        $region23: #{tpu_custom_call.1} parent=19 // pred_region
          %s175 = sand.u32 %s47, 1
          %s176 = scalar_lea.sflag [#allocation3], %s175
          %s177 = sand.u32 %s47, 1
          %s178 = smul.addr %s177, 8
          %s179 = scalar_lea.vmem [#allocation2], %s178
          %s181 = ssub.s32 128, 128
          %182 = vsyncadd %s176, %s181
          %s183 = sadd.s32 %s24, %s23
          %s184 = smul.addr %s183, 128
          %s185 = scalar_lea.hbm %s0, %s184
          %s187 = sshll.u32 %s179, 4
          %s188 = int_to_ptr.vmem [resolvable:$true] %s187
          %190 = dma.hbm_to_vmem [thread:$0]  %s185, 128, %s188, %s176
        $region24: #{tpu_custom_call.1} parent=19 // pred_fallthru
          _
        // Predicated region
        $region25: #{tpu_custom_call.1} parent=19 // pred_check
          %p191 = pneg %p83
        $region26: #{tpu_custom_call.1} parent=19 // pred_check_branch
          %193 = sbr.rel (%p191) target = $region28
        $region27: #{tpu_custom_call.1} parent=19 // pred_region
          %p194 = scmp.lt.s32.totalorder %s23, 1
          %s195 = scalar_select %p194, %s23, 1
          %s196 = scalar_lea.vmem %s1, %s195
        $region28: #{tpu_custom_call.1} parent=19 // pred_fallthru
          _
      $region20: #{tpu_custom_call.1} parent=5 // pred_fallthru
        _
      %p197 = scmp.le.s32.totalorder 1, %s16
      %p198 = scmp.lt.s32.totalorder %s16, 3
      %p199 = pnand %p197, %p198
      %p200 = pneg %p199
      // Predicated region
      $region29: #{tpu_custom_call.1} parent=5 // pred_check
        _
      $region30: #{tpu_custom_call.1} parent=5 // pred_check_branch
        %202 = sbr.rel (%p199) target = $region32
      $region31: #{tpu_custom_call.1} parent=5 // pred_region
        %s203 = ssub.s32 %s16, 1
        %s204 = sand.u32 %s50, 1
        %s205 = scalar_lea.sflag [#allocation3], %s204
        %s206 = sand.u32 %s50, 1
        %s207 = smul.addr %s206, 8
        %s208 = scalar_lea.vmem [#allocation2], %s207
        // Predicated region
        $region33: #{tpu_custom_call.1} parent=31 // pred_check
          %p209 = pneg %p63
        $region34: #{tpu_custom_call.1} parent=31 // pred_check_branch
          %211 = sbr.rel (%p209) target = $region36
        $region35: #{tpu_custom_call.1} parent=31 // pred_region
          %212 = dma.done %s205, 128
        $region36: #{tpu_custom_call.1} parent=31 // pred_fallthru
          _
        // Predicated region
        $region37: #{tpu_custom_call.1} parent=31 // pred_check
          %p213 = pneg %p110
        $region38: #{tpu_custom_call.1} parent=31 // pred_check_branch
          %215 = sbr.rel (%p213) target = $region40
        $region39: #{tpu_custom_call.1} parent=31 // pred_region
          %216 = dma.done [#allocation6], 256
        $region40: #{tpu_custom_call.1} parent=31 // pred_fallthru
          _
        %s217 = sand.u32 %s50, 1
        %s218 = scalar_lea.sflag [#allocation3], %s217
        %s219 = sand.u32 %s50, 1
        %s220 = smul.addr %s219, 8
        %s221 = scalar_lea.vmem [#allocation2], %s220
        %p222 = pneg %p63
        %p223 = pneg %p60
        %p224 = scmp.lt.s32.totalorder %s26, 1
        %s225 = scalar_select %p224, %s26, 1
        %s226 = scalar_lea.vmem %s1, %s225
        %p227 = pneg %p89
        %p228 = pneg %p86
        %p229 = pneg %p110
        %p230 = pneg %p107
        %p231 = pneg %p140
        %p232 = pneg %p137
        %s233 = sand.u32 %s127, 1
        %s234 = scalar_lea.sflag [#allocation4], %s233
        %s235 = sand.u32 %s127, 1
        %s236 = smul.addr %s235, 8
        %s237 = scalar_lea.vmem [#allocation7], %s236
        %p238 = scmp.lt.s32.totalorder %s26, 1
        %s239 = scalar_select %p238, %s26, 1
        %s240 = scalar_lea.vmem %s1, %s239
        %v241 = vld [vmem:[%s208] sm:$0xff]
        %v242 = vld [vmem:[#allocation5] sm:$0xff]
        %v243 = vld [vmem:[#allocation5 + $0x8] sm:$0xff]
        %s244 = scalar_lea.vmem %s240, %s28
        %v245 = vld [vmem:[%s244] sm:$0x1]
        %v247 = vlaneseq
        %v248 = vshrl.u32 %v247, 7
        %v249 = vsub.s32 0, %v248
        %v250 = vrot.slane %v245, %v249
        %vm252 = vcmask 130048
        %v254 = vsel %vm252, %v241, 0
        %256 = vmatprep.subr.mxu0 0.0
        %257 = vmatpush1.msra.mxu0 %v242
        %258 = vmatprep.subr.mxu0 0.0
        %259 = vmatpush1.msra.mxu0 %v243
        %260 = vmatprep.subr.mxu0 0.0
        %261 = vmatpush1.msra.mxu0 0.0
        %262 = vmatprep.subr.mxu0 0.0
        %263 = vmatpush1.msra.mxu0 0.0
        %264 = vmatprep.subr.mxu0 0.0
        %265 = vmatpush1.msra.mxu0 0.0
        %266 = vmatprep.subr.mxu0 0.0
        %267 = vmatpush1.msra.mxu0 0.0
        %268 = vmatprep.subr.mxu0 0.0
        %269 = vmatpush1.msra.mxu0 0.0
        %270 = vmatprep.subr.mxu0 0.0
        %271 = vmatpush1.msra.mxu0 0.0
        %272 = vmatprep.subr.mxu0 0.0
        %273 = vmatpush1.msra.mxu0 0.0
        %274 = vmatprep.subr.mxu0 0.0
        %275 = vmatpush1.msra.mxu0 0.0
        %276 = vmatprep.subr.mxu0 0.0
        %277 = vmatpush1.msra.mxu0 0.0
        %278 = vmatprep.subr.mxu0 0.0
        %279 = vmatpush1.msra.mxu0 0.0
        %280 = vmatprep.subr.mxu0 0.0
        %281 = vmatpush1.msra.mxu0 0.0
        %282 = vmatprep.subr.mxu0 0.0
        %283 = vmatpush1.msra.mxu0 0.0
        %284 = vmatprep.subr.mxu0 0.0
        %285 = vmatpush1.msra.mxu0 0.0
        %286 = vmatprep.subr.mxu0 0.0
        %287 = vmatpush1.msra.mxu0 0.0
        %288 = vmatprep.subr.mxu0 0.0
        %289 = vmatpush1.msra.mxu0 0.0
        %290 = vmatprep.subr.mxu0 0.0
        %291 = vmatpush1.msra.mxu0 0.0
        %292 = vmatprep.subr.mxu0 0.0
        %293 = vmatpush1.msra.mxu0 0.0
        %294 = vmatprep.subr.mxu0 0.0
        %295 = vmatpush1.msra.mxu0 0.0
        %296 = vmatprep.subr.mxu0 0.0
        %297 = vmatpush1.msra.mxu0 0.0
        %298 = vmatprep.subr.mxu0 0.0
        %299 = vmatpush1.msra.mxu0 0.0
        %300 = vmatprep.subr.mxu0 0.0
        %301 = vmatpush1.msra.mxu0 0.0
        %302 = vmatprep.subr.mxu0 0.0
        %303 = vmatpush1.msra.mxu0 0.0
        %304 = vmatprep.subr.mxu0 0.0
        %305 = vmatpush1.msra.mxu0 0.0
        %306 = vmatprep.subr.mxu0 0.0
        %307 = vmatpush1.msra.mxu0 0.0
        %308 = vmatprep.subr.mxu0 0.0
        %309 = vmatpush1.msra.mxu0 0.0
        %310 = vmatprep.subr.mxu0 0.0
        %311 = vmatpush1.msra.mxu0 0.0
        %312 = vmatprep.subr.mxu0 0.0
        %313 = vmatpush1.msra.mxu0 0.0
        %314 = vmatprep.subr.mxu0 0.0
        %315 = vmatpush1.msra.mxu0 0.0
        %316 = vmatprep.subr.mxu0 0.0
        %317 = vmatpush1.msra.mxu0 0.0
        %318 = vmatprep.subr.mxu0 0.0
        %319 = vmatpush1.msra.mxu0 0.0
        %320 = vmatprep.mubr.f32.mxu0 0.0
        %321 = vmatmul.mubr.f32.gmra.mrb[0].mxu0 %v254
        %v322 = vpop.f32.mrb[0].mxu0
        %v323 = vadd.f32 %v250, %v322
        %v324 = vpop.f32.mrb[0].mxu0
        %325 = vdwg.mxu0
        %326 = vst [vmem:[%s237] sm:$0xff] %v323
        %s327 = sand.u32 %s127, 1
        %s328 = scalar_lea.sflag [#allocation4], %s327
        %s329 = sand.u32 %s127, 1
        %s330 = smul.addr %s329, 8
        %s331 = scalar_lea.vmem [#allocation7], %s330
        // Predicated region
        $region41: #{tpu_custom_call.1} parent=31 // pred_check
          %p332 = pneg %p137
        $region42: #{tpu_custom_call.1} parent=31 // pred_check_branch
          %334 = sbr.rel (%p332) target = $region44
        $region43: #{tpu_custom_call.1} parent=31 // pred_region
          %s336 = ssub.s32 128, 128
          %337 = vsyncadd %s328, %s336
          %s338 = sadd.s32 %s28, %s27
          %s339 = sadd.s32 %s338, %s26
          %s340 = smul.addr %s339, 128
          %s341 = scalar_lea.hbm %s3, %s340
          %s343 = sshll.u32 %s331, 4
          %s344 = int_to_ptr.vmem [resolvable:$true] %s343
          %346 = dma.vmem_to_hbm [thread:$0]  %s344, 128, %s341, %s328
        $region44: #{tpu_custom_call.1} parent=31 // pred_fallthru
          _
      $region32: #{tpu_custom_call.1} parent=5 // pred_fallthru
        _
      %p347 = scmp.le.s32.totalorder 2, %s16
      // Predicated region
      $region45: #{tpu_custom_call.1} parent=5 // pred_check
        %p348 = pneg %p347
      $region46: #{tpu_custom_call.1} parent=5 // pred_check_branch
        %350 = sbr.rel (%p348) target = $region48
      $region47: #{tpu_custom_call.1} parent=5 // pred_region
        %s351 = ssub.s32 %s16, 2
        // Predicated region
        $region49: #{tpu_custom_call.1} parent=47 // pred_check
          %p352 = pneg %p143
        $region50: #{tpu_custom_call.1} parent=47 // pred_check_branch
          %354 = sbr.rel (%p352) target = $region52
        $region51: #{tpu_custom_call.1} parent=47 // pred_region
          %s355 = sand.u32 %s128, 1
          %s356 = scalar_lea.sflag [#allocation4], %s355
          %s357 = sand.u32 %s128, 1
          %s358 = smul.addr %s357, 8
          %s359 = scalar_lea.vmem [#allocation7], %s358
          %360 = dma.done %s356, 128
        $region52: #{tpu_custom_call.1} parent=47 // pred_fallthru
          _
      $region48: #{tpu_custom_call.1} parent=5 // pred_fallthru
        _
    $region6: #{tpu_custom_call.1} parent=1 // loop_footer
      %s20 = sadd.s32 1, %s16
    $region7: #{tpu_custom_call.1} parent=1 // loop_footer_branch
      %15 = sbr.rel target = $region3
    $region8: #{tpu_custom_call.1} parent=1 // loop_exit
      _
    %361 = vsyncpa [#allocation3], 1
    %s362 = scalar_lea.sflag [#allocation3], 1
    %363 = vsyncpa %s362, 1
    %364 = vsyncpa [#allocation6], 1
    %365 = vsyncpa [#allocation4], 1
    %s366 = scalar_lea.sflag [#allocation4], 1
    %367 = vsyncpa %s366, 1

</llo_original>
